<compile_context>
chip_gen: v6e
topology: v6e:2x2x1
jax: 0.10.0
libtpu: 0.0.40
codegen_flags: <defaults>
</compile_context>

<pallas_src>
import functools

import jax
import jax.numpy as jnp
from jax import lax
from jax.experimental import pallas as pl
from jax.experimental.pallas import tpu as pltpu

LANE = 128


def _cdiv(a, b):
    return (a + b - 1) // b


def _default_num_splits():
    # v7x has 2 TensorCores per chip; on single-core v5e/v6e a 2-way split
    # only adds a redundant accumulator init/flush and an extra output row.
    try:
        kind = jax.devices()[0].device_kind.lower()
    except Exception:  # pragma: no cover - defensive
        return 1
    return 2 if "v7" in kind else 1


def _combined_loss_kernel(x_ref, t_ref, acc_ref, *,
                          inner_rows, n_full, rem_rows, gamma):
    """Accumulates 3 global sums into the lane-dense (3, 8, 128) acc block.

      plane 0: sum of per-element focal loss (without the alpha factor)
      plane 1: sum of sigmoid(x) * t                (dice intersection)
      plane 2: sum of sigmoid(x) + t                (dice denominator)

    The (br, 128) block is processed in fixed `inner_rows`-row sub-chunks so
    elementwise temporaries stay small while the DMA block stays large.
    """
    j = pl.program_id(1)            # sequential reduction axis ("arbitrary")
    lane = x_ref.shape[1]

    @pl.when(j == 0)
    def _init():
        acc_ref[...] = jnp.zeros_like(acc_ref)

    def accumulate(x, t):
        x = x.astype(jnp.float32)
        t = t.astype(jnp.float32)
        # Shared transcendentals: one exp + one log1p per element (EUP slot).
        e = jnp.exp(-jnp.abs(x))
        softplus = jnp.log1p(e)
        # Numerically stable BCE-with-logits (== F.binary_cross_entropy_with_logits).
        bce = jnp.maximum(x, 0.0) - x * t + softplus
        inv = pl.reciprocal(1.0 + e, approx=False)      # exact, EUP slot
        p = jnp.where(x >= 0.0, inv, e * inv)           # stable sigmoid(x)
        pti = p * t                                     # reused for dice inter
        # For (binary) targets exp(-bce) == t*p + (1-t)*(1-p); its complement
        # simplifies to p + t - 2*p*t, saving ~4 VPU ops/element.
        # TODO(synk): soft (non-0/1) targets would need pt = exp(-bce) instead.
        one_m_pt = p + t - 2.0 * pti
        if gamma == 2.0:
            mod = one_m_pt * one_m_pt                   # square, not pow
        else:
            mod = one_m_pt ** gamma
        focal = mod * bce                               # alpha applied in epilogue

        rows = x.shape[0]

        def fold(v):
            # (rows, 128) -> (8, 128) partial sums via sublane-split VPU adds
            # (no per-step cross-lane XLU reduction).
            return jnp.sum(v.reshape(rows // 8, 8, lane), axis=0)

        acc_ref[0] += fold(focal)
        acc_ref[1] += fold(pti)
        acc_ref[2] += fold(p + t)

    if n_full > 0:
        @pl.loop(0, n_full)
        def _(c):
            r0 = pl.multiple_of(c * inner_rows, inner_rows)
            accumulate(x_ref[pl.ds(r0, inner_rows), :],
                       t_ref[pl.ds(r0, inner_rows), :])

    if rem_rows > 0:
        r0 = n_full * inner_rows                        # static remainder slice
        accumulate(x_ref[r0:r0 + rem_rows, :], t_ref[r0:r0 + rem_rows, :])


def combined_loss(inputs, targets, *,
                  alpha=0.5, beta=0.5, gamma=2.0, smooth=1.0,
                  focal_alpha=0.25, block_rows=4096, inner_rows=512,
                  num_splits=None, vmem_limit_bytes=32 * 1024 * 1024):
    """CombinedLoss.forward: alpha * focal(inputs, targets) + beta * dice(...)."""
    assert inputs.shape == targets.shape
    n_elems = int(inputs.size)
    if num_splits is None:
        num_splits = _default_num_splits()

    rows = n_elems // LANE
    if rows < 8:
        # Tiny tensors: kernel launch overhead dominates; fused XLA is enough.
        return _reference(inputs, targets, alpha=alpha, beta=beta, gamma=gamma,
                          smooth=smooth, focal_alpha=focal_alpha)

    num_splits = max(1, min(int(num_splits), rows // 8))
    block_rows = max(8, int(block_rows))

    # Spread the aligned rows evenly over grid steps so the (XLA-handled)
    # ragged tail stays tiny; br is a multiple of 8 (f32 sublane tiling),
    # capped at block_rows.
    steps = max(1, _cdiv(rows, num_splits * block_rows))
    steps = min(steps, rows // (num_splits * 8))        # keep br >= 8
    br = (rows // (num_splits * steps)) // 8 * 8
    n_full = br // inner_rows
    rem_rows = br - n_full * inner_rows
    main_rows = num_splits * steps * br
    main_elems = main_rows * LANE
    tail_elems = n_elems - main_elems

    flat_x = inputs.reshape(-1)
    flat_t = targets.reshape(-1)
    if n_elems % LANE == 0:
        # Free reshape of the full array; the grid only touches the first
        # main_rows rows, so no pad / mask / extra copy is needed.
        x2 = flat_x.reshape(rows, LANE)
        t2 = flat_t.reshape(rows, LANE)
    else:
        # Largest 128-aligned prefix; the lane remainder goes to the epilogue.
        aligned = rows * LANE
        x2 = flat_x[:aligned].reshape(rows, LANE)
        t2 = flat_t[:aligned].reshape(rows, LANE)

    kernel = functools.partial(
        _combined_loss_kernel,
        inner_rows=int(inner_rows), n_full=int(n_full), rem_rows=int(rem_rows),
        gamma=float(gamma))

    in_map = lambda i, j: (i * steps + j, 0)
    partials = pl.pallas_call(
        kernel,
        out_shape=jax.ShapeDtypeStruct((num_splits, 3, 8, LANE), jnp.float32),
        grid_spec=pltpu.PrefetchScalarGridSpec(
            num_scalar_prefetch=0,
            grid=(num_splits, steps),
            in_specs=[
                pl.BlockSpec((br, LANE), in_map),
                pl.BlockSpec((br, LANE), in_map),
            ],
            out_specs=pl.BlockSpec((None, 3, 8, LANE),
                                   lambda i, j: (i, 0, 0, 0)),
        ),
        compiler_params=pltpu.CompilerParams(
            dimension_semantics=("parallel", "arbitrary"),
            vmem_limit_bytes=int(vmem_limit_bytes)),
    )(x2, t2)

    # Tiny XLA epilogue: reduce the lane-dense partials, fold in the ragged
    # tail (if any), and combine the two losses.
    sums = jnp.sum(partials, axis=(0, 2, 3))            # (3,)
    focal_sum, inter_sum, denom_sum = sums[0], sums[1], sums[2]

    if tail_elems > 0:
        xt = flat_x[main_elems:].astype(jnp.float32)
        tt = flat_t[main_elems:].astype(jnp.float32)
        bce = jnp.maximum(xt, 0.0) - xt * tt + jnp.log1p(jnp.exp(-jnp.abs(xt)))
        pt = jnp.exp(-bce)
        focal_sum = focal_sum + jnp.sum((1.0 - pt) ** gamma * bce)
        p = jax.nn.sigmoid(xt)
        inter_sum = inter_sum + jnp.sum(p * tt)
        denom_sum = denom_sum + jnp.sum(p) + jnp.sum(tt)

    focal_loss = focal_alpha * focal_sum / n_elems       # reduction='mean'
    dice = (2.0 * inter_sum + smooth) / (denom_sum + smooth)
    return alpha * focal_loss + beta * (1.0 - dice)


def _reference(inputs, targets, alpha=0.5, beta=0.5, gamma=2.0, smooth=1.0,
               focal_alpha=0.25):
    """Pure-JAX reference, faithful to the PyTorch CombinedLoss."""
    x = inputs.astype(jnp.float32)
    t = targets.astype(jnp.float32)
    bce = jnp.maximum(x, 0.0) - x * t + jnp.log1p(jnp.exp(-jnp.abs(x)))
    pt = jnp.exp(-bce)
    focal = jnp.mean(focal_alpha * (1.0 - pt) ** gamma * bce)
    p = jax.nn.sigmoid(x).reshape(-1)
    tf = t.reshape(-1)
    inter = jnp.sum(p * tf)
    dice = (2.0 * inter + smooth) / (jnp.sum(p) + jnp.sum(tf) + smooth)
    return alpha * focal + beta * (1.0 - dice)


if __name__ == "__main__":
    key = jax.random.PRNGKey(0)
    k1, k2, k3, k4, k5, k6, k7, k8 = jax.random.split(key, 8)

    # 1) Spec-sized NCHW case: (2, 4, 16, 16) logits + binary targets.
    x1 = jax.random.normal(k1, (2, 4, 16, 16), dtype=jnp.float32)
    t1 = (jax.random.uniform(k2, (2, 4, 16, 16)) > 0.5).astype(jnp.float32)
    loss1 = jax.block_until_ready(combined_loss(x1, t1))
    ref1 = _reference(x1, t1)
    assert jnp.allclose(loss1, ref1, atol=1e-5, rtol=1e-5), (loss1, ref1)

    # 2) Unaligned size (not a multiple of 128) -> exercises the XLA tail path.
    x2 = jax.random.normal(k3, (3, 5, 17, 19), dtype=jnp.float32)
    t2 = (jax.random.uniform(k4, (3, 5, 17, 19)) > 0.5).astype(jnp.float32)
    loss2 = jax.block_until_ready(combined_loss(x2, t2))
    ref2 = _reference(x2, t2)
    assert jnp.allclose(loss2, ref2, atol=1e-5, rtol=1e-5), (loss2, ref2)

    # 3) Multi-step grid (small block_rows) -> exercises the accumulator loop.
    x3 = jax.random.normal(k5, (2, 4, 64, 64), dtype=jnp.float32)
    t3 = (jax.random.uniform(k6, (2, 4, 64, 64)) > 0.5).astype(jnp.float32)
    loss3 = jax.block_until_ready(combined_loss(x3, t3, block_rows=16))
    ref3 = _reference(x3, t3)
    assert jnp.allclose(loss3, ref3, atol=1e-5, rtol=1e-5), (loss3, ref3)

    # 4) Larger tensor -> exercises the in-kernel pl.loop sub-chunking.
    x4 = jax.random.normal(k7, (2, 4, 128, 192), dtype=jnp.float32)
    t4 = (jax.random.uniform(k8, (2, 4, 128, 192)) > 0.5).astype(jnp.float32)
    loss4 = jax.block_until_ready(combined_loss(x4, t4))
    ref4 = _reference(x4, t4)
    assert jnp.allclose(loss4, ref4, atol=1e-5, rtol=1e-5), (loss4, ref4)

    print("KERNEL_OK")
</pallas_src>

<mosaic_0001>
module attributes {stable_mosaic.version = 11 : i64} {
  func.func @_combined_loss_kernel(%arg0: i32, %arg1: i32, %arg2: memref<16x128xf32, #tpu.memory_space<vmem>>, %arg3: memref<16x128xf32, #tpu.memory_space<vmem>>, %arg4: memref<1x3x8x128xf32, #tpu.memory_space<vmem>>) attributes {dimension_semantics = [#tpu.dimension_semantics<parallel>, #tpu.dimension_semantics<arbitrary>], iteration_bounds = array<i64: 1, 1>, scalar_prefetch = 0 : i64, scratch_operands = 0 : i64, tpu.core_type = #tpu.core_type<tc>, window_params = [{transform_indices = @transform_0, window_bounds = array<i64: 16, 128>}, {transform_indices = @transform_1, window_bounds = array<i64: 16, 128>}, {transform_indices = @transform_2, window_bounds = array<i64: 1, 3, 8, 128>}]} {
    %c0_i32 = arith.constant 0 : i32
    %0 = arith.cmpi eq, %arg1, %c0_i32 : i32
    %1 = arith.extui %0 : i1 to i32
    %c0_i32_0 = arith.constant 0 : i32
    %2 = arith.cmpi ne, %1, %c0_i32_0 : i32
    scf.if %2 {
      %cst_33 = arith.constant 0.000000e+00 : f32
      %54 = vector.broadcast %cst_33 : f32 to vector<3x8x128xf32>
      %c0_34 = arith.constant 0 : index
      %c0_35 = arith.constant 0 : index
      %c0_36 = arith.constant 0 : index
      %c0_37 = arith.constant 0 : index
      %55 = vector.load %arg4[%c0_34, %c0_35, %c0_36, %c0_37] : memref<1x3x8x128xf32, #tpu.memory_space<vmem>>, vector<1x3x8x128xf32>
      %56 = vector.shape_cast %55 : vector<1x3x8x128xf32> to vector<3x8x128xf32>
      %57 = vector.shape_cast %54 : vector<3x8x128xf32> to vector<1x3x8x128xf32>
      tpu.vector_store %arg4[%c0_34, %c0_35, %c0_36, %c0_37], %57 {strides = array<i32>} : memref<1x3x8x128xf32, #tpu.memory_space<vmem>>, vector<1x3x8x128xf32>,
    } else {
    }
    %c0 = arith.constant 0 : index
    %c0_1 = arith.constant 0 : index
    %3 = vector.load %arg2[%c0, %c0_1] : memref<16x128xf32, #tpu.memory_space<vmem>>, vector<16x128xf32>
    %c0_2 = arith.constant 0 : index
    %c0_3 = arith.constant 0 : index
    %4 = vector.load %arg3[%c0_2, %c0_3] : memref<16x128xf32, #tpu.memory_space<vmem>>, vector<16x128xf32>
    %5 = math.absf %3 : vector<16x128xf32>
    %cst = arith.constant 0.000000e+00 : f32
    %6 = vector.broadcast %cst : f32 to vector<16x128xf32>
    %7 = arith.subf %6, %5 : vector<16x128xf32>
    %8 = math.exp %7 : vector<16x128xf32>
    %9 = math.log1p %8 : vector<16x128xf32>
    %cst_4 = arith.constant 0.000000e+00 : f32
    %10 = vector.broadcast %cst_4 : f32 to vector<16x128xf32>
    %11 = arith.maximumf %3, %10 : vector<16x128xf32>
    %12 = arith.mulf %3, %4 : vector<16x128xf32>
    %13 = arith.subf %11, %12 : vector<16x128xf32>
    %14 = arith.addf %13, %9 : vector<16x128xf32>
    %cst_5 = arith.constant 1.000000e+00 : f32
    %15 = vector.broadcast %cst_5 : f32 to vector<16x128xf32>
    %16 = arith.addf %15, %8 : vector<16x128xf32>
    %17 = tpu.reciprocal %16 : vector<16x128xf32> -> vector<16x128xf32>
    %cst_6 = arith.constant 0.000000e+00 : f32
    %18 = vector.broadcast %cst_6 : f32 to vector<16x128xf32>
    %19 = arith.cmpf oge, %3, %18 : vector<16x128xf32>
    %20 = arith.mulf %8, %17 : vector<16x128xf32>
    %21 = arith.select %19, %17, %20 : vector<16x128xi1>, vector<16x128xf32>
    %22 = arith.mulf %21, %4 : vector<16x128xf32>
    %23 = arith.addf %21, %4 : vector<16x128xf32>
    %cst_7 = arith.constant 2.000000e+00 : f32
    %24 = vector.broadcast %cst_7 : f32 to vector<16x128xf32>
    %25 = arith.mulf %24, %22 : vector<16x128xf32>
    %26 = arith.subf %23, %25 : vector<16x128xf32>
    %27 = arith.mulf %26, %26 : vector<16x128xf32>
    %28 = arith.mulf %27, %14 : vector<16x128xf32>
    %c0_8 = arith.constant 0 : index
    %c0_9 = arith.constant 0 : index
    %c0_10 = arith.constant 0 : index
    %c0_11 = arith.constant 0 : index
    %29 = vector.load %arg4[%c0_8, %c0_9, %c0_10, %c0_11] : memref<1x3x8x128xf32, #tpu.memory_space<vmem>>, vector<1x1x8x128xf32>
    %30 = vector.shape_cast %29 : vector<1x1x8x128xf32> to vector<8x128xf32>
    %31 = vector.shape_cast %28 : vector<16x128xf32> to vector<2x8x128xf32>
    %cst_12 = arith.constant dense<0.000000e+00> : vector<8x128xf32>
    %32 = vector.multi_reduction <add>, %31, %cst_12 [0] : vector<2x8x128xf32> to vector<8x128xf32>
    %33 = arith.addf %30, %32 : vector<8x128xf32>
    %c0_13 = arith.constant 0 : index
    %c0_14 = arith.constant 0 : index
    %c0_15 = arith.constant 0 : index
    %c0_16 = arith.constant 0 : index
    %34 = vector.load %arg4[%c0_13, %c0_14, %c0_15, %c0_16] : memref<1x3x8x128xf32, #tpu.memory_space<vmem>>, vector<1x1x8x128xf32>
    %35 = vector.shape_cast %34 : vector<1x1x8x128xf32> to vector<8x128xf32>
    %36 = vector.shape_cast %33 : vector<8x128xf32> to vector<1x1x8x128xf32>
    tpu.vector_store %arg4[%c0_13, %c0_14, %c0_15, %c0_16], %36 {strides = array<i32>} : memref<1x3x8x128xf32, #tpu.memory_space<vmem>>, vector<1x1x8x128xf32>,
    %c0_17 = arith.constant 0 : index
    %c1 = arith.constant 1 : index
    %c0_18 = arith.constant 0 : index
    %c0_19 = arith.constant 0 : index
    %37 = vector.load %arg4[%c0_17, %c1, %c0_18, %c0_19] : memref<1x3x8x128xf32, #tpu.memory_space<vmem>>, vector<1x1x8x128xf32>
    %38 = vector.shape_cast %37 : vector<1x1x8x128xf32> to vector<8x128xf32>
    %39 = vector.shape_cast %22 : vector<16x128xf32> to vector<2x8x128xf32>
    %cst_20 = arith.constant dense<0.000000e+00> : vector<8x128xf32>
    %40 = vector.multi_reduction <add>, %39, %cst_20 [0] : vector<2x8x128xf32> to vector<8x128xf32>
    %41 = arith.addf %38, %40 : vector<8x128xf32>
    %c0_21 = arith.constant 0 : index
    %c1_22 = arith.constant 1 : index
    %c0_23 = arith.constant 0 : index
    %c0_24 = arith.constant 0 : index
    %42 = vector.load %arg4[%c0_21, %c1_22, %c0_23, %c0_24] : memref<1x3x8x128xf32, #tpu.memory_space<vmem>>, vector<1x1x8x128xf32>
    %43 = vector.shape_cast %42 : vector<1x1x8x128xf32> to vector<8x128xf32>
    %44 = vector.shape_cast %41 : vector<8x128xf32> to vector<1x1x8x128xf32>
    tpu.vector_store %arg4[%c0_21, %c1_22, %c0_23, %c0_24], %44 {strides = array<i32>} : memref<1x3x8x128xf32, #tpu.memory_space<vmem>>, vector<1x1x8x128xf32>,
    %c0_25 = arith.constant 0 : index
    %c2 = arith.constant 2 : index
    %c0_26 = arith.constant 0 : index
    %c0_27 = arith.constant 0 : index
    %45 = vector.load %arg4[%c0_25, %c2, %c0_26, %c0_27] : memref<1x3x8x128xf32, #tpu.memory_space<vmem>>, vector<1x1x8x128xf32>
    %46 = vector.shape_cast %45 : vector<1x1x8x128xf32> to vector<8x128xf32>
    %47 = arith.addf %21, %4 : vector<16x128xf32>
    %48 = vector.shape_cast %47 : vector<16x128xf32> to vector<2x8x128xf32>
    %cst_28 = arith.constant dense<0.000000e+00> : vector<8x128xf32>
    %49 = vector.multi_reduction <add>, %48, %cst_28 [0] : vector<2x8x128xf32> to vector<8x128xf32>
    %50 = arith.addf %46, %49 : vector<8x128xf32>
    %c0_29 = arith.constant 0 : index
    %c2_30 = arith.constant 2 : index
    %c0_31 = arith.constant 0 : index
    %c0_32 = arith.constant 0 : index
    %51 = vector.load %arg4[%c0_29, %c2_30, %c0_31, %c0_32] : memref<1x3x8x128xf32, #tpu.memory_space<vmem>>, vector<1x1x8x128xf32>
    %52 = vector.shape_cast %51 : vector<1x1x8x128xf32> to vector<8x128xf32>
    %53 = vector.shape_cast %50 : vector<8x128xf32> to vector<1x1x8x128xf32>
    tpu.vector_store %arg4[%c0_29, %c2_30, %c0_31, %c0_32], %53 {strides = array<i32>} : memref<1x3x8x128xf32, #tpu.memory_space<vmem>>, vector<1x1x8x128xf32>,
    return
  }
  func.func @transform_0(%arg0: i32, %arg1: i32) -> (i32, i32) {
    %c1_i32 = arith.constant 1 : i32
    %0 = arith.muli %arg0, %c1_i32 : i32
    %1 = arith.addi %0, %arg1 : i32
    %c0_i32 = arith.constant 0 : i32
    %c0_i32_0 = arith.constant 0 : i32
    return %1, %c0_i32 : i32, i32
  }
  func.func @transform_1(%arg0: i32, %arg1: i32) -> (i32, i32) {
    %c1_i32 = arith.constant 1 : i32
    %0 = arith.muli %arg0, %c1_i32 : i32
    %1 = arith.addi %0, %arg1 : i32
    %c0_i32 = arith.constant 0 : i32
    %c0_i32_0 = arith.constant 0 : i32
    return %1, %c0_i32 : i32, i32
  }
  func.func @transform_2(%arg0: i32, %arg1: i32) -> (i32, i32, i32, i32) {
    %c0_i32 = arith.constant 0 : i32
    %c0_i32_0 = arith.constant 0 : i32
    %c0_i32_1 = arith.constant 0 : i32
    %c0_i32_2 = arith.constant 0 : i32
    return %arg0, %c0_i32, %c0_i32_0, %c0_i32_1 : i32, i32, i32, i32
  }
}

</mosaic_0001>

<llo_original>
// kernel: tpu_custom_call.1
$region0: #{tpu_custom_call.1}
  #allocation0 [shape = 'u32[]', space=smem, size = 0x4, offset = 0x4, fixed_abs, tag = 'smem constant byte address 0x4 - core index']
  #allocation1 [shape = 'u32[144,128]{1,0:T(1,128)}', space=vmem, size = 0x12000, scoped, tag = 'internal scratch']
  %s0 = inlined_call_operand.hbm [shape: f32[16,128], index: 0, kind: input, shape index: {}]
  %s1 = inlined_call_operand.hbm [shape: f32[16,128], index: 1, kind: input, shape index: {}]
  %s2 = inlined_call_operand.hbm [shape: f32[1,3,8,128], index: 2, kind: output, shape index: {}]
  %s3 = sld [smem:[#allocation0]]
  $region30: #{tpu_custom_call.1} parent=0
    _
  %s5 = ssub.s32 1, %s3
  %s6 = scalar_select 0, %s5, %s3
  $region1: #{tpu_custom_call.1} parent=0
    #allocation2 [shape = 'u8[8192]{0}', space=vmem, size = 0x2000, scoped, tag = 'input window, operand 0, single buffered']
    #allocation3 [shape = 's32[1]{0}', space=sflag, size = 0x4, scoped, tag = 'scoped memory for tpu_custom_call.1']
    #allocation4 [shape = 's32[1]{0}', space=sflag, size = 0x4, scoped, tag = 'scoped memory for tpu_custom_call.1']
    #allocation5 [shape = 'u8[8192]{0}', space=vmem, size = 0x2000, scoped, tag = 'input window, operand 1, single buffered']
    #allocation6 [shape = 's32[1]{0}', space=sflag, size = 0x4, scoped, tag = 'scoped memory for tpu_custom_call.1']
    #allocation7 [shape = 'u8[12288]{0}', space=vmem, size = 0x3000, scoped, tag = 'output window, operand 0, single buffered']
    %7 = vsyncpa [#allocation3], 0
    %8 = vsyncpa [#allocation6], 0
    %9 = vsyncpa [#allocation4], 0
    // Predicated region
    $region2: #{tpu_custom_call.1} parent=1 // pred_check
      _
    $region3: #{tpu_custom_call.1} parent=1 // pred_check_branch
      %11 = sbr.rel (0) target = $region5
    $region4: #{tpu_custom_call.1} parent=1 // pred_region
      %s12 = sadd.s32 0, 0
      %s13 = smul.u32 2, %s12
      %s15 = ssub.s32 256, 256
      %16 = vsyncadd [#allocation3], %s15
      %s17 = smul.addr %s13, 128
      %s18 = scalar_lea.hbm %s0, %s17
      %s19 = sshll.u32 [#allocation2], 4
      %s20 = int_to_ptr.vmem [resolvable:$true] %s19
      %25 = dma.hbm_to_vmem [thread:$0]  %s18, 256, %s20, [#allocation3], 128, 128, 8
    $region5: #{tpu_custom_call.1} parent=1 // pred_fallthru
      _
    // Predicated region
    $region6: #{tpu_custom_call.1} parent=1 // pred_check
      _
    $region7: #{tpu_custom_call.1} parent=1 // pred_check_branch
      %27 = sbr.rel (0) target = $region9
    $region8: #{tpu_custom_call.1} parent=1 // pred_region
      %s28 = sadd.s32 0, 0
      %s29 = smul.u32 2, %s28
      %s31 = ssub.s32 256, 256
      %32 = vsyncadd [#allocation6], %s31
      %s33 = smul.addr %s29, 128
      %s34 = scalar_lea.hbm %s1, %s33
      %s35 = sshll.u32 [#allocation5], 4
      %s36 = int_to_ptr.vmem [resolvable:$true] %s35
      %41 = dma.hbm_to_vmem [thread:$0]  %s34, 256, %s36, [#allocation6], 128, 128, 8
    $region9: #{tpu_custom_call.1} parent=1 // pred_fallthru
      _
    // Predicated region
    $region10: #{tpu_custom_call.1} parent=1 // pred_check
      _
    $region11: #{tpu_custom_call.1} parent=1 // pred_check_branch
      %43 = sbr.rel (0) target = $region13
    $region12: #{tpu_custom_call.1} parent=1 // pred_region
      %44 = dma.done [#allocation3], 256
    $region13: #{tpu_custom_call.1} parent=1 // pred_fallthru
      _
    // Predicated region
    $region14: #{tpu_custom_call.1} parent=1 // pred_check
      _
    $region15: #{tpu_custom_call.1} parent=1 // pred_check_branch
      %46 = sbr.rel (0) target = $region17
    $region16: #{tpu_custom_call.1} parent=1 // pred_region
      %47 = dma.done [#allocation6], 256
    $region17: #{tpu_custom_call.1} parent=1 // pred_fallthru
      _
    %s48 = sadd.s32 0, 0
    %s49 = smul.u32 2, %s48
    %s50 = sadd.s32 0, 0
    %s51 = smul.u32 2, %s50
    %p52 = scmp.eq.s32.totalorder 0, 0
    // Predicated region
    $region18: #{tpu_custom_call.1} parent=1 // pred_check
      %p53 = pneg %p52
    $region19: #{tpu_custom_call.1} parent=1 // pred_check_branch
      %55 = sbr.rel (%p53) target = $region21
    $region20: #{tpu_custom_call.1} parent=1 // pred_region
      %56 = vst [vmem:[#allocation7] sm:$0xff] 0.0
      %57 = vst [vmem:[#allocation7 + $0x8] sm:$0xff] 0.0
      %58 = vst [vmem:[#allocation7 + $0x10] sm:$0xff] 0.0
    $region21: #{tpu_custom_call.1} parent=1 // pred_fallthru
      _
    %v59 = vld [vmem:[#allocation2] sm:$0xff]
    %v60 = vld [vmem:[#allocation2 + $0x8] sm:$0xff]
    %v61 = vld [vmem:[#allocation5] sm:$0xff]
    %v62 = vld [vmem:[#allocation5 + $0x8] sm:$0xff]
    %v63 = vand.u32 2147483647, %v59
    %v64 = vand.u32 2147483647, %v60
    %v65 = vsub.f32 0.0, %v63
    %v66 = vsub.f32 0.0, %v64
    %v67 = vmul.f32 %v65, 1.442695
    %v68 = vpow.pop %v67
    %v69 = vmul.f32 %v66, 1.442695
    %v70 = vpow.pop %v69
    %v71 = vadd.f32 %v68, 1.0
    %v72 = vlog2.pop %v71
    %v73 = vmul.f32 %v72, 0.6931472
    %v74 = vmul.f32 -0.5, %v68
    %v75 = vadd.f32 %v74, 1.0
    %v76 = vmul.f32 %v75, %v68
    %v77 = vand.u32 2147483647, %v68
    %vm78 = vcmp.lt.f32.partialorder %v77, 0.0004427343
    %v79 = vsel %vm78, %v76, %v73
    %v80 = vadd.f32 %v70, 1.0
    %v81 = vlog2.pop %v80
    %v82 = vmul.f32 %v81, 0.6931472
    %v83 = vmul.f32 -0.5, %v70
    %v84 = vadd.f32 %v83, 1.0
    %v85 = vmul.f32 %v84, %v70
    %v86 = vand.u32 2147483647, %v70
    %vm87 = vcmp.lt.f32.partialorder %v86, 0.0004427343
    %v88 = vsel %vm87, %v85, %v82
    %v89 = vmax.f32 %v59, 0.0
    %v90 = vmax.f32 %v60, 0.0
    %v91 = vmul.f32 %v59, %v61
    %v92 = vmul.f32 %v60, %v62
    %v93 = vsub.f32 %v89, %v91
    %v94 = vsub.f32 %v90, %v92
    %v95 = vadd.f32 %v93, %v79
    %v96 = vadd.f32 %v94, %v88
    %v97 = vadd.f32 %v68, 1.0
    %v98 = vadd.f32 %v70, 1.0
    %v99 = vrcp.pop %v97
    %v100 = vrcp.pop %v98
    %vm101 = vcmp.ge.f32.partialorder %v59, 0.0
    %vm102 = vcmp.ge.f32.partialorder %v60, 0.0
    %v103 = vmul.f32 %v68, %v99
    %v104 = vmul.f32 %v70, %v100
    %v105 = vsel %vm101, %v99, %v103
    %v106 = vsel %vm102, %v100, %v104
    %v107 = vmul.f32 %v105, %v61
    %v108 = vmul.f32 %v106, %v62
    %v109 = vadd.f32 %v105, %v61
    %v110 = vadd.f32 %v106, %v62
    %v111 = vmul.f32 %v107, 2.0
    %v112 = vmul.f32 %v108, 2.0
    %v113 = vsub.f32 %v109, %v111
    %v114 = vsub.f32 %v110, %v112
    %v115 = vmul.f32 %v113, %v113
    %v116 = vmul.f32 %v114, %v114
    %v117 = vmul.f32 %v115, %v95
    %v118 = vmul.f32 %v116, %v96
    %v119 = vld [vmem:[#allocation7] sm:$0xff]
    %v120 = vadd.f32 %v117, %v118
    %v121 = vadd.f32 %v119, %v120
    %122 = vst [vmem:[#allocation7] sm:$0xff] %v121
    %s123 = scalar_lea.vmem [#allocation7], 8
    %v124 = vld [vmem:[%s123] sm:$0xff]
    %v125 = vadd.f32 %v107, %v108
    %v126 = vadd.f32 %v124, %v125
    %127 = vst [vmem:[%s123] sm:$0xff] %v126
    %s128 = scalar_lea.vmem [#allocation7], 16
    %v129 = vld [vmem:[%s128] sm:$0xff]
    %v130 = vadd.f32 %v109, %v110
    %v131 = vadd.f32 %v129, %v130
    %132 = vst [vmem:[%s128] sm:$0xff] %v131
    // Predicated region
    $region22: #{tpu_custom_call.1} parent=1 // pred_check
      _
    $region23: #{tpu_custom_call.1} parent=1 // pred_check_branch
      %134 = sbr.rel (0) target = $region25
    $region24: #{tpu_custom_call.1} parent=1 // pred_region
      %s136 = ssub.s32 384, 384
      %137 = vsyncadd [#allocation4], %s136
      %s138 = sshll.u32 [#allocation7], 4
      %s139 = int_to_ptr.vmem [resolvable:$true] %s138
      %144 = dma.vmem_to_hbm [thread:$0]  %s139, 384, %s2, [#allocation4], 128, 128, 8
    $region25: #{tpu_custom_call.1} parent=1 // pred_fallthru
      _
    // Predicated region
    $region26: #{tpu_custom_call.1} parent=1 // pred_check
      _
    $region27: #{tpu_custom_call.1} parent=1 // pred_check_branch
      %146 = sbr.rel (0) target = $region29
    $region28: #{tpu_custom_call.1} parent=1 // pred_region
      %147 = dma.done [#allocation4], 384
    $region29: #{tpu_custom_call.1} parent=1 // pred_fallthru
      _
    %148 = vsyncpa [#allocation3], 1
    %149 = vsyncpa [#allocation6], 1
    %150 = vsyncpa [#allocation4], 1

</llo_original>
